<compile_context>
chip_gen: v7x
topology: tpu7x:2x2x1
jax: 0.10.0
libtpu: 0.0.40
codegen_flags: <defaults>
</compile_context>

<pallas_src>
import functools

import jax
import jax.numpy as jnp
from jax import lax
from jax.experimental import pallas as pl
from jax.experimental.pallas import tpu as pltpu

EPS = 1e-5


def _round_up(x: int, m: int) -> int:
    return ((x + m - 1) // m) * m


def fused_mp_kernel(a_hbm, x0_hbm, w_ref, gb_ref, o_ref, a_vmem, copy_sem,
                    *, n_true: int, compute_dtype):
    """One grid step == one GNN layer: conv -> BatchNorm(train) -> ReLU (dropout p=0)."""
    layer = pl.program_id(0)

    # Layer 0: one-time DMAs.  A goes to a single-buffered VMEM scratch that stays
    # resident for all layers; x0 goes straight into the output block, which doubles
    # as the activation carry (constant index map => same VMEM buffer every step).
    @pl.when(layer == 0)
    def _():
        cp_a = pltpu.make_async_copy(a_hbm, a_vmem, copy_sem.at[0])
        cp_x = pltpu.make_async_copy(x0_hbm, o_ref, copy_sem.at[1])
        cp_a.start()
        cp_x.start()
        cp_a.wait()
        cp_x.wait()

    x = o_ref[...].astype(compute_dtype)   # carried activation (f32 -> MXU dtype)
    a = a_vmem[...]                        # resident adjacency (already MXU dtype)
    w = w_ref[...]                         # streamed per-layer weight (MXU dtype)

    # Message passing + linear transform (two MXU matmuls, f32 accumulation).
    msg = jnp.dot(a, x, preferred_element_type=jnp.float32)
    h = jnp.dot(msg.astype(compute_dtype), w, preferred_element_type=jnp.float32)

    # Training-mode BatchNorm over the node axis, one-pass statistics in f32.
    # Padded node rows of h are exactly zero (A's padded rows are zero, bias dropped),
    # so summing the padded block and dividing by the true node count is exact.
    inv_n = 1.0 / float(n_true)
    s = jnp.sum(h, axis=0, keepdims=True)
    sq = jnp.sum(h * h, axis=0, keepdims=True)
    mean = s * inv_n
    var = jnp.maximum(sq * inv_n - mean * mean, 0.0)   # clamp: one-pass cancellation

    gamma = gb_ref[0:1, :]                 # (1, d_pad)
    beta = gb_ref[1:2, :]                  # (1, d_pad)
    scale = gamma * lax.rsqrt(var + EPS)
    shift = beta - mean * scale

    # norm -> relu (act_first=False); dropout p=0.0 is identity.  Writing into the
    # output block carries the activation to the next grid step for free; the HBM
    # writeback happens only once, after the last layer.
    o_ref[...] = jnp.maximum(h * scale + shift, 0.0)


def _vmem_limit_bytes(n_pad: int, d_pad: int, in_itemsize: int) -> int:
    a_bytes = n_pad * n_pad * in_itemsize              # resident A (single buffer)
    w_bytes = 2 * d_pad * d_pad * in_itemsize          # double-buffered weight stream
    gb_bytes = 2 * 2 * d_pad * 4                       # double-buffered gamma/beta
    out_bytes = n_pad * d_pad * 4                      # f32 carry / output block
    needed = a_bytes + w_bytes + gb_bytes + out_bytes
    try:
        phys = pltpu.get_tpu_info().vmem_capacity_bytes
    except Exception:
        phys = 64 << 20                                # conservative (v7x per-TC VMEM)
    return max(32 << 20, min(needed + (8 << 20), int(phys * 0.85)))


def mp_module_forward(a, x, w_stack, gamma_stack, beta_stack, *, use_bf16=True):
    """Fused _stack_forward (residual_type='none'): all layers in a single pallas_call.

    bf16 MXU inputs are the default on all generations (f32 accumulation, f32 BN/ReLU).
    """
    n_true, d_true = x.shape
    num_layers = w_stack.shape[0]

    n_pad = _round_up(n_true, 128)
    d_pad = _round_up(d_true, 128)

    compute_dtype = jnp.bfloat16 if use_bf16 else jnp.float32
    in_itemsize = 2 if use_bf16 else 4

    # Pad with exact zeros (required invariant, see header), cast MXU inputs in the
    # wrapper so no casts run inside the kernel on resident data.
    a_p = jnp.pad(a, ((0, n_pad - n_true), (0, n_pad - n_true))).astype(compute_dtype)
    x_p = jnp.pad(x, ((0, n_pad - n_true), (0, d_pad - d_true)))  # f32 (carry dtype)
    w_p = jnp.pad(w_stack,
                  ((0, 0), (0, d_pad - d_true), (0, d_pad - d_true))).astype(compute_dtype)
    gb_p = jnp.pad(jnp.stack([gamma_stack, beta_stack], axis=1),   # (L, 2, d_pad) f32
                   ((0, 0), (0, 0), (0, d_pad - d_true)))

    kernel = functools.partial(fused_mp_kernel, n_true=n_true,
                               compute_dtype=compute_dtype)

    out = pl.pallas_call(
        kernel,
        out_shape=jax.ShapeDtypeStruct((n_pad, d_pad), jnp.float32),
        grid_spec=pltpu.PrefetchScalarGridSpec(
            num_scalar_prefetch=0,
            grid=(num_layers,),
            in_specs=[
                pl.BlockSpec(memory_space=pl.ANY),                         # A (HBM, one-time DMA)
                pl.BlockSpec(memory_space=pl.ANY),                         # x0 (HBM, one-time DMA)
                pl.BlockSpec((None, d_pad, d_pad), lambda l: (l, 0, 0)),   # W_l (streamed)
                pl.BlockSpec((None, 2, d_pad), lambda l: (l, 0, 0)),       # [gamma_l; beta_l]
            ],
            out_specs=pl.BlockSpec((n_pad, d_pad), lambda l: (0, 0)),      # output == carry
            scratch_shapes=[
                pltpu.VMEM((n_pad, n_pad), compute_dtype),                 # resident A
                pltpu.SemaphoreType.DMA((2,)),                             # A / x0 copies
            ],
        ),
        compiler_params=pltpu.CompilerParams(
            dimension_semantics=("arbitrary",),        # sequential carry over layers
            vmem_limit_bytes=_vmem_limit_bytes(n_pad, d_pad, in_itemsize),
        ),
    )(a_p, x_p, w_p, gb_p)

    return out[:n_true, :d_true]


def init_params(key, dim, num_layers):
    ws, bs, gammas, betas = [], [], [], []
    for i in range(num_layers):
        kw, kb, kg, kbeta = jax.random.split(jax.random.fold_in(key, i), 4)
        ws.append(jax.random.normal(kw, (dim, dim), jnp.float32) / jnp.sqrt(dim))
        bs.append(jax.random.normal(kb, (dim,), jnp.float32) * 0.01)
        gammas.append(1.0 + 0.1 * jax.random.normal(kg, (dim,), jnp.float32))
        betas.append(0.1 * jax.random.normal(kbeta, (dim,), jnp.float32))
    return (jnp.stack(ws), jnp.stack(bs), jnp.stack(gammas), jnp.stack(betas))


def build_adjacency(key, n):
    # random symmetric binary adjacency + self loops, row-normalized
    raw = jax.random.bernoulli(key, p=0.2, shape=(n, n)).astype(jnp.float32)
    adj = jnp.maximum(raw, raw.T)
    adj = jnp.maximum(adj, jnp.eye(n, dtype=jnp.float32))
    deg = jnp.sum(adj, axis=1, keepdims=True)
    return adj / deg


def reference_forward(a, x, w_stack, b_stack, gamma_stack, beta_stack, *, use_bf16=True):
    # Pure-JAX reference of the module semantics (includes the conv bias, which is
    # a mathematical no-op before training-mode BatchNorm).
    for l in range(w_stack.shape[0]):
        w, b = w_stack[l], b_stack[l]
        gamma, beta = gamma_stack[l], beta_stack[l]
        if use_bf16:
            msg = jnp.dot(a.astype(jnp.bfloat16), x.astype(jnp.bfloat16),
                          preferred_element_type=jnp.float32)
            h = jnp.dot(msg.astype(jnp.bfloat16), w.astype(jnp.bfloat16),
                        preferred_element_type=jnp.float32) + b
        else:
            h = a @ x @ w + b
        mean = jnp.mean(h, axis=0, keepdims=True)
        var = jnp.mean((h - mean) ** 2, axis=0, keepdims=True)
        h = (h - mean) / jnp.sqrt(var + EPS) * gamma + beta
        x = jnp.maximum(h, 0.0)
    return x


if __name__ == "__main__":
    key = jax.random.PRNGKey(0)
    k_adj, k_x, k_p = jax.random.split(key, 3)

    num_nodes = 64    # N (padded to 128 inside the wrapper)
    dim = 32          # hidden feature dim (padded to 128 lanes inside the wrapper)
    num_layers = 3

    a = build_adjacency(k_adj, num_nodes)
    x = jax.random.normal(k_x, (num_nodes, dim), jnp.float32)
    w_s, b_s, g_s, be_s = init_params(k_p, dim, num_layers)

    # Default fast path: bf16 MXU inputs, f32 accumulation + f32 BN/ReLU (all gens).
    out = mp_module_forward(a, x, w_s, g_s, be_s)
    out = jax.block_until_ready(out)
    ref = reference_forward(a, x, w_s, b_s, g_s, be_s, use_bf16=True)
    assert out.shape == (num_nodes, dim)
    assert jnp.all(jnp.isfinite(out))
    assert jnp.allclose(out, ref, atol=3e-3, rtol=3e-3)

    # Full-f32 MXU path (kept for validation / high-precision use).
    out_f32 = mp_module_forward(a, x, w_s, g_s, be_s, use_bf16=False)
    out_f32 = jax.block_until_ready(out_f32)
    ref_f32 = reference_forward(a, x, w_s, b_s, g_s, be_s, use_bf16=False)
    assert out_f32.shape == (num_nodes, dim)
    assert jnp.allclose(out_f32, ref_f32, atol=2e-3, rtol=2e-3)

    print("KERNEL_OK")
</pallas_src>

<mosaic_0001>
module attributes {stable_mosaic.version = 11 : i64} {
  func.func @fused_mp_kernel(%arg0: i32, %arg1: memref<128x128xbf16, #tpu.memory_space<any>>, %arg2: memref<128x128xf32, #tpu.memory_space<any>>, %arg3: memref<1x128x128xbf16, #tpu.memory_space<vmem>>, %arg4: memref<1x2x128xf32, #tpu.memory_space<vmem>>, %arg5: memref<128x128xf32, #tpu.memory_space<vmem>>, %arg6: memref<128x128xbf16, #tpu.memory_space<vmem>>, %arg7: memref<2x!tpu.dma_semaphore, #tpu.memory_space<semaphore_mem>>) attributes {dimension_semantics = [#tpu.dimension_semantics<arbitrary>], iteration_bounds = array<i64: 3>, scalar_prefetch = 0 : i64, scratch_operands = 2 : i64, tpu.core_type = #tpu.core_type<tc>, window_params = [{}, {}, {transform_indices = @transform_2, window_bounds = array<i64: 1, 128, 128>}, {transform_indices = @transform_3, window_bounds = array<i64: 1, 2, 128>}, {pipeline_mode = #tpu.pipeline_mode<synchronous>, transform_indices = @transform_4, window_bounds = array<i64: 128, 128>}]} {
    %c0_i32 = arith.constant 0 : i32
    %0 = arith.cmpi eq, %arg0, %c0_i32 : i32
    %1 = arith.extui %0 : i1 to i32
    %c0_i32_0 = arith.constant 0 : i32
    %2 = arith.cmpi ne, %1, %c0_i32_0 : i32
    scf.if %2 {
      %c0_i32_22 = arith.constant 0 : i32
      %41 = tpu.memref_slice %arg7[%c0_i32_22] : memref<2x!tpu.dma_semaphore, #tpu.memory_space<semaphore_mem>> -> memref<1x!tpu.dma_semaphore, #tpu.memory_space<semaphore_mem>>
      %42 = tpu.memref_squeeze %41 : memref<1x!tpu.dma_semaphore, #tpu.memory_space<semaphore_mem>> -> memref<!tpu.dma_semaphore, #tpu.memory_space<semaphore_mem>>
      tpu.enqueue_dma source(%arg1 : memref<128x128xbf16, #tpu.memory_space<any>>) target(%arg6 : memref<128x128xbf16, #tpu.memory_space<vmem>>) target_semaphore(%42 : memref<!tpu.dma_semaphore, #tpu.memory_space<semaphore_mem>>)
      %c1_i32 = arith.constant 1 : i32
      %43 = tpu.memref_slice %arg7[%c1_i32] : memref<2x!tpu.dma_semaphore, #tpu.memory_space<semaphore_mem>> -> memref<1x!tpu.dma_semaphore, #tpu.memory_space<semaphore_mem>>
      %44 = tpu.memref_squeeze %43 : memref<1x!tpu.dma_semaphore, #tpu.memory_space<semaphore_mem>> -> memref<!tpu.dma_semaphore, #tpu.memory_space<semaphore_mem>>
      tpu.enqueue_dma source(%arg2 : memref<128x128xf32, #tpu.memory_space<any>>) target(%arg5 : memref<128x128xf32, #tpu.memory_space<vmem>>) target_semaphore(%44 : memref<!tpu.dma_semaphore, #tpu.memory_space<semaphore_mem>>)
      %c0_i32_23 = arith.constant 0 : i32
      %45 = tpu.memref_slice %arg7[%c0_i32_23] : memref<2x!tpu.dma_semaphore, #tpu.memory_space<semaphore_mem>> -> memref<1x!tpu.dma_semaphore, #tpu.memory_space<semaphore_mem>>
      %46 = tpu.memref_squeeze %45 : memref<1x!tpu.dma_semaphore, #tpu.memory_space<semaphore_mem>> -> memref<!tpu.dma_semaphore, #tpu.memory_space<semaphore_mem>>
      tpu.wait_dma2 semaphore(%46 : memref<!tpu.dma_semaphore, #tpu.memory_space<semaphore_mem>>) src(%arg1 : memref<128x128xbf16, #tpu.memory_space<any>>) dst(%arg6 : memref<128x128xbf16, #tpu.memory_space<vmem>>)
      %c1_i32_24 = arith.constant 1 : i32
      %47 = tpu.memref_slice %arg7[%c1_i32_24] : memref<2x!tpu.dma_semaphore, #tpu.memory_space<semaphore_mem>> -> memref<1x!tpu.dma_semaphore, #tpu.memory_space<semaphore_mem>>
      %48 = tpu.memref_squeeze %47 : memref<1x!tpu.dma_semaphore, #tpu.memory_space<semaphore_mem>> -> memref<!tpu.dma_semaphore, #tpu.memory_space<semaphore_mem>>
      tpu.wait_dma2 semaphore(%48 : memref<!tpu.dma_semaphore, #tpu.memory_space<semaphore_mem>>) src(%arg2 : memref<128x128xf32, #tpu.memory_space<any>>) dst(%arg5 : memref<128x128xf32, #tpu.memory_space<vmem>>)
    } else {
    }
    %c0 = arith.constant 0 : index
    %c0_1 = arith.constant 0 : index
    %3 = vector.load %arg5[%c0, %c0_1] : memref<128x128xf32, #tpu.memory_space<vmem>>, vector<128x128xf32>
    %4 = arith.truncf %3 : vector<128x128xf32> to vector<128x128xbf16>
    %c0_2 = arith.constant 0 : index
    %c0_3 = arith.constant 0 : index
    %5 = vector.load %arg6[%c0_2, %c0_3] : memref<128x128xbf16, #tpu.memory_space<vmem>>, vector<128x128xbf16>
    %c0_4 = arith.constant 0 : index
    %c0_5 = arith.constant 0 : index
    %c0_6 = arith.constant 0 : index
    %6 = vector.load %arg3[%c0_4, %c0_5, %c0_6] : memref<1x128x128xbf16, #tpu.memory_space<vmem>>, vector<1x128x128xbf16>
    %7 = vector.shape_cast %6 : vector<1x128x128xbf16> to vector<128x128xbf16>
    %cst = arith.constant dense<0.000000e+00> : vector<128x128xf32>
    %8 = tpu.matmul %5, %4, %cst {dimension_numbers = #tpu.dot_dimension_numbers<[1], [0], [0], [1], [0, 0, 1, 1], [], []>} : vector<128x128xbf16>, vector<128x128xbf16>, vector<128x128xf32> -> vector<128x128xf32>
    %9 = arith.truncf %8 : vector<128x128xf32> to vector<128x128xbf16>
    %cst_7 = arith.constant dense<0.000000e+00> : vector<128x128xf32>
    %10 = tpu.matmul %9, %7, %cst_7 {dimension_numbers = #tpu.dot_dimension_numbers<[1], [0], [0], [1], [0, 0, 1, 1], [], []>} : vector<128x128xbf16>, vector<128x128xbf16>, vector<128x128xf32> -> vector<128x128xf32>
    %cst_8 = arith.constant dense<0.000000e+00> : vector<128xf32>
    %11 = vector.multi_reduction <add>, %10, %cst_8 [0] : vector<128x128xf32> to vector<128xf32>
    %12 = vector.shape_cast %11 : vector<128xf32> to vector<1x128xf32>
    %13 = arith.mulf %10, %10 : vector<128x128xf32>
    %cst_9 = arith.constant dense<0.000000e+00> : vector<128xf32>
    %14 = vector.multi_reduction <add>, %13, %cst_9 [0] : vector<128x128xf32> to vector<128xf32>
    %15 = vector.shape_cast %14 : vector<128xf32> to vector<1x128xf32>
    %cst_10 = arith.constant 1.562500e-02 : f32
    %16 = vector.broadcast %cst_10 : f32 to vector<1x128xf32>
    %17 = arith.mulf %12, %16 : vector<1x128xf32>
    %cst_11 = arith.constant 1.562500e-02 : f32
    %18 = vector.broadcast %cst_11 : f32 to vector<1x128xf32>
    %19 = arith.mulf %15, %18 : vector<1x128xf32>
    %20 = arith.mulf %17, %17 : vector<1x128xf32>
    %21 = arith.subf %19, %20 : vector<1x128xf32>
    %cst_12 = arith.constant 0.000000e+00 : f32
    %22 = vector.broadcast %cst_12 : f32 to vector<1x128xf32>
    %23 = arith.maximumf %21, %22 : vector<1x128xf32>
    %c0_13 = arith.constant 0 : index
    %c0_14 = arith.constant 0 : index
    %c0_15 = arith.constant 0 : index
    %24 = vector.load %arg4[%c0_13, %c0_14, %c0_15] : memref<1x2x128xf32, #tpu.memory_space<vmem>>, vector<1x1x128xf32>
    %25 = vector.shape_cast %24 : vector<1x1x128xf32> to vector<1x128xf32>
    %c0_16 = arith.constant 0 : index
    %c1 = arith.constant 1 : index
    %c0_17 = arith.constant 0 : index
    %26 = vector.load %arg4[%c0_16, %c1, %c0_17] : memref<1x2x128xf32, #tpu.memory_space<vmem>>, vector<1x1x128xf32>
    %27 = vector.shape_cast %26 : vector<1x1x128xf32> to vector<1x128xf32>
    %cst_18 = arith.constant 9.99999974E-6 : f32
    %28 = vector.broadcast %cst_18 : f32 to vector<1x128xf32>
    %29 = arith.addf %23, %28 : vector<1x128xf32>
    %30 = math.rsqrt %29 : vector<1x128xf32>
    %31 = arith.mulf %25, %30 : vector<1x128xf32>
    %32 = arith.mulf %17, %31 : vector<1x128xf32>
    %33 = arith.subf %27, %32 : vector<1x128xf32>
    %34 = vector.broadcast %31 : vector<1x128xf32> to vector<128x128xf32>
    %35 = arith.mulf %10, %34 : vector<128x128xf32>
    %36 = vector.broadcast %33 : vector<1x128xf32> to vector<128x128xf32>
    %37 = arith.addf %35, %36 : vector<128x128xf32>
    %cst_19 = arith.constant 0.000000e+00 : f32
    %38 = vector.broadcast %cst_19 : f32 to vector<128x128xf32>
    %39 = arith.maximumf %37, %38 : vector<128x128xf32>
    %c0_20 = arith.constant 0 : index
    %c0_21 = arith.constant 0 : index
    %40 = vector.load %arg5[%c0_20, %c0_21] : memref<128x128xf32, #tpu.memory_space<vmem>>, vector<128x128xf32>
    tpu.vector_store %arg5[%c0_20, %c0_21], %39 {strides = array<i32>} : memref<128x128xf32, #tpu.memory_space<vmem>>, vector<128x128xf32>,
    return
  }
  func.func @transform_2(%arg0: i32) -> (i32, i32, i32) {
    %c0_i32 = arith.constant 0 : i32
    %c0_i32_0 = arith.constant 0 : i32
    %c0_i32_1 = arith.constant 0 : i32
    return %arg0, %c0_i32, %c0_i32_0 : i32, i32, i32
  }
  func.func @transform_3(%arg0: i32) -> (i32, i32, i32) {
    %c0_i32 = arith.constant 0 : i32
    %c0_i32_0 = arith.constant 0 : i32
    %c0_i32_1 = arith.constant 0 : i32
    return %arg0, %c0_i32, %c0_i32_0 : i32, i32, i32
  }
  func.func @transform_4(%arg0: i32) -> (i32, i32) {
    %c0_i32 = arith.constant 0 : i32
    %c0_i32_0 = arith.constant 0 : i32
    %c0_i32_1 = arith.constant 0 : i32
    return %c0_i32, %c0_i32_0 : i32, i32
  }
}

</mosaic_0001>

<llo_original>
// kernel: tpu_custom_call.1
$region0: #{tpu_custom_call.1}
  #allocation0 [shape = 'u32[]', space=smem, size = 0x4, offset = 0x4, fixed_abs, tag = 'smem constant byte address 0x4 - core index']
  #allocation1 [shape = 'u32[144,128]{1,0:T(1,128)}', space=vmem, size = 0x12000, scoped, tag = 'internal scratch']
  #allocation2 [shape = 'bf16[128,128]{1,0:T(16,128)(2,1)}', space=vmem, size = 0x8000, scoped, tag = 'scratch operand']
  #allocation3 [shape = 's32[2]{0}', space=sflag, size = 0x8, scoped, tag = 'scratch operand']
  #allocation8 [shape = 's32[]', space=sflag, size = 0x4, offset = 0, fixed_abs, tag = 'sflag constant byte address 0x0 - dummy sync flag']
  #allocation9 [shape = 's32[]', space=sflag, size = 0x4, offset = 0, fixed_abs, tag = 'sflag constant byte address 0x0 - dummy sync flag']
  #allocation10 [shape = 'u32[]', space=smem, size = 0x4, offset = 0x44, fixed_abs, tag = 'smem constant byte address 0x44 - assertion arg 0']
  #allocation11 [shape = 'u32[]', space=smem, size = 0x4, offset = 0x48, fixed_abs, tag = 'smem constant byte address 0x48 - assertion arg 1']
  #allocation12 [shape = 's32[]', space=sflag, size = 0x4, offset = 0, fixed_abs, tag = 'sflag constant byte address 0x0 - dummy sync flag']
  #allocation13 [shape = 's32[]', space=sflag, size = 0x4, offset = 0, fixed_abs, tag = 'sflag constant byte address 0x0 - dummy sync flag']
  %s0 = inlined_call_operand.hbm [shape: bf16[128,128], index: 0, kind: input, shape index: {}]
  %s1 = inlined_call_operand.hbm [shape: f32[128,128], index: 1, kind: input, shape index: {}]
  %s2 = inlined_call_operand.hbm [shape: bf16[3,128,128], index: 2, kind: input, shape index: {}]
  %s3 = inlined_call_operand.vmem [shape: f32[3,2,128], index: 3, kind: input, shape index: {}]
  %s4 = inlined_call_operand.hbm [shape: f32[128,128], index: 4, kind: output, shape index: {}]
  %s5 = sld [smem:[#allocation0]]
  $region57: #{tpu_custom_call.1} parent=0
    _
  %s7 = ssub.s32 1, %s5
  %s8 = scalar_select 0, %s7, %s5
  $region1: #{tpu_custom_call.1} parent=0
    #allocation4 [shape = 'u8[65536]{0}', space=vmem, size = 0x10000, scoped, tag = 'input window, operand 2']
    #allocation5 [shape = 's32[2]{0}', space=sflag, size = 0x8, scoped, tag = 'scoped memory for tpu_custom_call.1']
    #allocation6 [shape = 's32[2]{0}', space=sflag, size = 0x8, scoped, tag = 'scoped memory for tpu_custom_call.1']
    #allocation7 [shape = 'u8[65536]{0}', space=vmem, size = 0x10000, scoped, tag = 'output window, operand 0, single buffered']
    %9 = vsyncpa [#allocation5], 0
    %s10 = scalar_lea.sflag [#allocation5], 1
    %11 = vsyncpa %s10, 0
    %12 = vsyncpa [#allocation6], 0
    loop: start=0, step=1, limit=5
    $region2: #{tpu_custom_call.1} parent=1 // loop_pre_header
      _
    $region3: #{tpu_custom_call.1} parent=1 // loop_header
      %s14 = sphi 0, %s18
      %p15 = scmp.ge.s32.totalorder %s14, 5
      %s24 = sphi 0, %s26
      %s27 = sphi 0, %s24
      %s28 = sphi 0, %s27
      %s44 = sphi 0, %s28
      %s50 = sphi 0, %s52
      %s53 = sphi 0, %s50
      %s54 = sphi 0, %s53
      %s70 = sphi 0, %s54
      %s74 = sphi 0, %s74
      %s76 = sphi 0, %s74
      %s77 = sphi 0, %s76
      %s91 = sphi 0, %s77
    $region4: #{tpu_custom_call.1} parent=1 // loop_header_branch
      %17 = sbr.rel (%p15) target = $region8
    $region5: #{tpu_custom_call.1} parent=1 // loop_body
      %s19 = ssub.s32 %s14, 1
      %s20 = ssub.s32 %s14, 2
      %s21 = sadd.s32 %s14, 1
      %s22 = ssub.s32 %s14, %s21
      %p23 = scmp.eq.s32.totalorder %s22, 0
      %s25 = sadd.s32 %s24, 1
      %s26 = scalar_select %p23, %s24, %s25
      %p29 = pneg %p23
      %p30 = scmp.eq.s32.totalorder %s14, 2
      %p31 = por %p29, %p30
      %p32 = scmp.ne.s32.totalorder %s24, %s27
      %p33 = scmp.eq.s32.totalorder %s14, 0
      %p34 = por %p32, %p33
      %p35 = scmp.ne.s32.totalorder %s24, %s27
      %p36 = scmp.eq.s32.totalorder %s19, 2
      %p37 = por %p35, %p36
      %p38 = scmp.ne.s32.totalorder %s27, %s28
      %p39 = scmp.eq.s32.totalorder %s19, 0
      %p40 = por %p38, %p39
      %p41 = scmp.ne.s32.totalorder %s27, %s28
      %p42 = scmp.eq.s32.totalorder %s20, 2
      %p43 = por %p41, %p42
      %p45 = scmp.ne.s32.totalorder %s28, %s44
      %p46 = scmp.eq.s32.totalorder %s20, 0
      %p47 = por %p45, %p46
      %s48 = ssub.s32 %s14, %s21
      %p49 = scmp.eq.s32.totalorder %s48, 0
      %s51 = sadd.s32 %s50, 1
      %s52 = scalar_select %p49, %s50, %s51
      %p55 = pneg %p49
      %p56 = scmp.eq.s32.totalorder %s14, 2
      %p57 = por %p55, %p56
      %p58 = scmp.ne.s32.totalorder %s50, %s53
      %p59 = scmp.eq.s32.totalorder %s14, 0
      %p60 = por %p58, %p59
      %p61 = scmp.ne.s32.totalorder %s50, %s53
      %p62 = scmp.eq.s32.totalorder %s19, 2
      %p63 = por %p61, %p62
      %p64 = scmp.ne.s32.totalorder %s53, %s54
      %p65 = scmp.eq.s32.totalorder %s19, 0
      %p66 = por %p64, %p65
      %p67 = scmp.ne.s32.totalorder %s53, %s54
      %p68 = scmp.eq.s32.totalorder %s20, 2
      %p69 = por %p67, %p68
      %p71 = scmp.ne.s32.totalorder %s54, %s70
      %p72 = scmp.eq.s32.totalorder %s20, 0
      %p73 = por %p71, %p72
      %s75 = sadd.s32 %s74, 1
      %p78 = scmp.eq.s32.totalorder %s14, 2
      %p79 = scmp.ne.s32.totalorder %s74, %s76
      %p80 = scmp.eq.s32.totalorder %s14, 0
      %p81 = por %p79, %p80
      %p82 = scmp.ne.s32.totalorder %s74, %s76
      %p83 = scmp.eq.s32.totalorder %s19, 2
      %p84 = por %p82, %p83
      %p85 = scmp.ne.s32.totalorder %s76, %s77
      %p86 = scmp.eq.s32.totalorder %s19, 0
      %p87 = por %p85, %p86
      %p88 = scmp.ne.s32.totalorder %s76, %s77
      %p89 = scmp.eq.s32.totalorder %s20, 2
      %p90 = por %p88, %p89
      %p92 = scmp.ne.s32.totalorder %s77, %s91
      %p93 = scmp.eq.s32.totalorder %s20, 0
      %p94 = por %p92, %p93
      %p95 = scmp.le.s32.totalorder 1, %s14
      %p96 = scmp.lt.s32.totalorder %s14, 4
      %p97 = pnand %p95, %p96
      %p98 = pneg %p97
      // Predicated region
      $region9: #{tpu_custom_call.1} parent=5 // pred_check
        _
      $region10: #{tpu_custom_call.1} parent=5 // pred_check_branch
        %100 = sbr.rel (%p97) target = $region12
      $region11: #{tpu_custom_call.1} parent=5 // pred_region
        %s101 = ssub.s32 %s14, 1
      $region12: #{tpu_custom_call.1} parent=5 // pred_fallthru
        _
      %p102 = scmp.lt.s32.totalorder %s14, 3
      // Predicated region
      $region13: #{tpu_custom_call.1} parent=5 // pred_check
        %p103 = pneg %p102
      $region14: #{tpu_custom_call.1} parent=5 // pred_check_branch
        %105 = sbr.rel (%p103) target = $region16
      $region15: #{tpu_custom_call.1} parent=5 // pred_region
        // Predicated region
        $region17: #{tpu_custom_call.1} parent=15 // pred_check
          %p106 = pneg %p34
        $region18: #{tpu_custom_call.1} parent=15 // pred_check_branch
          %108 = sbr.rel (%p106) target = $region20
        $region19: #{tpu_custom_call.1} parent=15 // pred_region
          %s109 = sand.u32 %s24, 1
          %s110 = scalar_lea.sflag [#allocation5], %s109
          %s111 = sand.u32 %s24, 1
          %s112 = smul.addr %s111, 64
          %s113 = scalar_lea.vmem [#allocation4], %s112
          %s115 = ssub.s32 1024, 1024
          %116 = vsyncadd %s110, %s115
          %s117 = smul.addr %s14, 16
          %s118 = smul.addr %s117, 64
          %s119 = scalar_lea.hbm %s2, %s118
          %s120 = sshll.u32 %s113, 4
          %s121 = int_to_ptr.vmem [resolvable:$true] %s120
          %126 = dma.hbm_to_vmem [thread:$0]  %s119, 1024, %s121, %s110, 64, 64, 4
        $region20: #{tpu_custom_call.1} parent=15 // pred_fallthru
          _
        // Predicated region
        $region21: #{tpu_custom_call.1} parent=15 // pred_check
          %p127 = pneg %p60
        $region22: #{tpu_custom_call.1} parent=15 // pred_check_branch
          %129 = sbr.rel (%p127) target = $region24
        $region23: #{tpu_custom_call.1} parent=15 // pred_region
          %p130 = scmp.lt.s32.totalorder %s14, 2
          %s131 = scalar_select %p130, %s14, 2
          %s132 = smul.addr %s131, 2
          %s133 = scalar_lea.vmem %s3, %s132
        $region24: #{tpu_custom_call.1} parent=15 // pred_fallthru
          _
      $region16: #{tpu_custom_call.1} parent=5 // pred_fallthru
        _
      %p134 = scmp.le.s32.totalorder 1, %s14
      %p135 = scmp.lt.s32.totalorder %s14, 4
      %p136 = pnand %p134, %p135
      %p137 = pneg %p136
      // Predicated region
      $region25: #{tpu_custom_call.1} parent=5 // pred_check
        _
      $region26: #{tpu_custom_call.1} parent=5 // pred_check_branch
        %139 = sbr.rel (%p136) target = $region28
      $region27: #{tpu_custom_call.1} parent=5 // pred_region
        %s140 = ssub.s32 %s14, 1
        %s141 = sand.u32 %s27, 1
        %s142 = scalar_lea.sflag [#allocation5], %s141
        %s143 = sand.u32 %s27, 1
        %s144 = smul.addr %s143, 64
        %s145 = scalar_lea.vmem [#allocation4], %s144
        // Predicated region
        $region29: #{tpu_custom_call.1} parent=27 // pred_check
          %p146 = pneg %p40
        $region30: #{tpu_custom_call.1} parent=27 // pred_check_branch
          %148 = sbr.rel (%p146) target = $region32
        $region31: #{tpu_custom_call.1} parent=27 // pred_region
          %149 = dma.done %s142, 1024
        $region32: #{tpu_custom_call.1} parent=27 // pred_fallthru
          _
        %s150 = sand.u32 %s27, 1
        %s151 = scalar_lea.sflag [#allocation5], %s150
        %s152 = sand.u32 %s27, 1
        %s153 = smul.addr %s152, 64
        %s154 = scalar_lea.vmem [#allocation4], %s153
        %p155 = pneg %p40
        %p156 = pneg %p37
        %p157 = scmp.lt.s32.totalorder %s19, 2
        %s158 = scalar_select %p157, %s19, 2
        %s159 = smul.addr %s158, 2
        %s160 = scalar_lea.vmem %s3, %s159
        %p161 = pneg %p66
        %p162 = pneg %p63
        %p163 = pneg %p87
        %p164 = pneg %p84
        %p165 = scmp.lt.s32.totalorder %s19, 2
        %s166 = scalar_select %p165, %s19, 2
        %s167 = smul.addr %s166, 2
        %s168 = scalar_lea.vmem %s3, %s167
        %p170 = scmp.eq.s32.totalorder %s19, 0
        // Predicated region
        $region33: #{tpu_custom_call.1} parent=27 // pred_check
          %p171 = pneg %p170
        $region34: #{tpu_custom_call.1} parent=27 // pred_check_branch
          %173 = sbr.rel (%p171) target = $region36
        $region35: #{tpu_custom_call.1} parent=27 // pred_region
          // Predicated region
          $region37: #{tpu_custom_call.1} parent=35 // pred_check
            _
          $region38: #{tpu_custom_call.1} parent=35 // pred_check_branch
            %175 = sbr.rel target = $region40
          $region39: #{tpu_custom_call.1} parent=35 // pred_region
            %176 = sst [smem:[#allocation10]] [#allocation9]
            %177 = sst [smem:[#allocation11]] [#allocation8]
          $region40: #{tpu_custom_call.1} parent=35 // pred_fallthru
            _
          %179 = shalt.err (0)
          %s181 = sshll.u32 [#allocation2], 4
          %s182 = int_to_ptr.vmem [resolvable:$true] %s181
          %184 = dma.hbm_to_vmem [thread:$0]  %s0, 1024, %s182, [#allocation3]
          %s185 = scalar_lea.sflag [#allocation3], 1
          // Predicated region
          $region41: #{tpu_custom_call.1} parent=35 // pred_check
            _
          $region42: #{tpu_custom_call.1} parent=35 // pred_check_branch
            %187 = sbr.rel target = $region44
          $region43: #{tpu_custom_call.1} parent=35 // pred_region
            %188 = sst [smem:[#allocation10]] [#allocation13]
            %189 = sst [smem:[#allocation11]] [#allocation12]
          $region44: #{tpu_custom_call.1} parent=35 // pred_fallthru
            _
          %191 = shalt.err (0)
          %s193 = sshll.u32 [#allocation7], 4
          %s194 = int_to_ptr.vmem [resolvable:$true] %s193
          %196 = dma.hbm_to_vmem [thread:$0]  %s1, 2048, %s194, %s185
          %s197 = smul.u32 4, 16
          %s198 = smul.u32 %s197, 1
          %s199 = sshll.u32 %s198, 4
          %200 = dma.done [#allocation3], %s199
          %s201 = smul.u32 128, 1
          %s202 = sshll.u32 %s201, 4
          %203 = dma.done %s185, %s202
        $region36: #{tpu_custom_call.1} parent=27 // pred_fallthru
          _
        %v204 = vld [vmem:[#allocation7] sm:$0xff]
        %v205 = vld [vmem:[#allocation7 + $0x8] sm:$0xff]
        %v206 = vld [vmem:[#allocation7 + $0x10] sm:$0xff]
        %v207 = vld [vmem:[#allocation7 + $0x18] sm:$0xff]
        %v208 = vld [vmem:[#allocation7 + $0x20] sm:$0xff]
        %v209 = vld [vmem:[#allocation7 + $0x28] sm:$0xff]
        %v210 = vld [vmem:[#allocation7 + $0x30] sm:$0xff]
        %v211 = vld [vmem:[#allocation7 + $0x38] sm:$0xff]
        %v212 = vld [vmem:[#allocation7 + $0x40] sm:$0xff]
        %v213 = vld [vmem:[#allocation7 + $0x48] sm:$0xff]
        %v214 = vld [vmem:[#allocation7 + $0x50] sm:$0xff]
        %v215 = vld [vmem:[#allocation7 + $0x58] sm:$0xff]
        %v216 = vld [vmem:[#allocation7 + $0x60] sm:$0xff]
        %v217 = vld [vmem:[#allocation7 + $0x68] sm:$0xff]
        %v218 = vld [vmem:[#allocation7 + $0x70] sm:$0xff]
        %v219 = vld [vmem:[#allocation7 + $0x78] sm:$0xff]
        %v220 = vpack.c.bf16 %v205, %v204
        %v221 = vpack.c.bf16 %v207, %v206
        %v222 = vpack.c.bf16 %v209, %v208
        %v223 = vpack.c.bf16 %v211, %v210
        %v224 = vpack.c.bf16 %v213, %v212
        %v225 = vpack.c.bf16 %v215, %v214
        %v226 = vpack.c.bf16 %v217, %v216
        %v227 = vpack.c.bf16 %v219, %v218
        %v228 = vld [vmem:[#allocation2] sm:$0xff]
        %v229 = vld [vmem:[#allocation2 + $0x8] sm:$0xff]
        %v230 = vld [vmem:[#allocation2 + $0x10] sm:$0xff]
        %v231 = vld [vmem:[#allocation2 + $0x18] sm:$0xff]
        %v232 = vld [vmem:[#allocation2 + $0x20] sm:$0xff]
        %v233 = vld [vmem:[#allocation2 + $0x28] sm:$0xff]
        %v234 = vld [vmem:[#allocation2 + $0x30] sm:$0xff]
        %v235 = vld [vmem:[#allocation2 + $0x38] sm:$0xff]
        %v236 = vld [vmem:[%s145] sm:$0xf]
        %v237 = vld [vmem:[%s145 + $0x4] sm:$0xf]
        %v238 = vld [vmem:[%s145 + $0x8] sm:$0xf]
        %v239 = vld [vmem:[%s145 + $0xc] sm:$0xf]
        %v240 = vld [vmem:[%s145 + $0x10] sm:$0xf]
        %v241 = vld [vmem:[%s145 + $0x14] sm:$0xf]
        %v242 = vld [vmem:[%s145 + $0x18] sm:$0xf]
        %v243 = vld [vmem:[%s145 + $0x1c] sm:$0xf]
        %v244 = vld [vmem:[%s145 + $0x20] sm:$0xf]
        %v245 = vld [vmem:[%s145 + $0x24] sm:$0xf]
        %v246 = vld [vmem:[%s145 + $0x28] sm:$0xf]
        %v247 = vld [vmem:[%s145 + $0x2c] sm:$0xf]
        %v248 = vld [vmem:[%s145 + $0x30] sm:$0xf]
        %v249 = vld [vmem:[%s145 + $0x34] sm:$0xf]
        %v250 = vld [vmem:[%s145 + $0x38] sm:$0xf]
        %v251 = vld [vmem:[%s145 + $0x3c] sm:$0xf]
        %252 = vmatprep.subr.bf16.mxu0 0
        %253 = vmatpush1.bf16.msra.mxu0 %v220
        %254 = vmatprep.subr.bf16.mxu0 0
        %255 = vmatpush1.bf16.msra.mxu0 %v221
        %256 = vmatprep.subr.bf16.mxu0 0
        %257 = vmatpush1.bf16.msra.mxu0 %v222
        %258 = vmatprep.subr.bf16.mxu0 0
        %259 = vmatpush1.bf16.msra.mxu0 %v223
        %260 = vmatprep.subr.bf16.mxu0 0
        %261 = vmatpush1.bf16.msra.mxu0 %v224
        %262 = vmatprep.subr.bf16.mxu0 0
        %263 = vmatpush1.bf16.msra.mxu0 %v225
        %264 = vmatprep.subr.bf16.mxu0 0
        %265 = vmatpush1.bf16.msra.mxu0 %v226
        %266 = vmatprep.subr.bf16.mxu0 0
        %267 = vmatpush1.bf16.msra.mxu0 %v227
        %268 = vmatprep.subr.bf16.mxu0 0
        %269 = vmatpush1.bf16.msra.mxu0 0
        %270 = vmatprep.subr.bf16.mxu0 0
        %271 = vmatpush1.bf16.msra.mxu0 0
        %272 = vmatprep.subr.bf16.mxu0 0
        %273 = vmatpush1.bf16.msra.mxu0 0
        %274 = vmatprep.subr.bf16.mxu0 0
        %275 = vmatpush1.bf16.msra.mxu0 0
        %276 = vmatprep.subr.bf16.mxu0 0
        %277 = vmatpush1.bf16.msra.mxu0 0
        %278 = vmatprep.subr.bf16.mxu0 0
        %279 = vmatpush1.bf16.msra.mxu0 0
        %280 = vmatprep.subr.bf16.mxu0 0
        %281 = vmatpush1.bf16.msra.mxu0 0
        %282 = vmatprep.subr.bf16.mxu0 0
        %283 = vmatpush1.bf16.msra.mxu0 0
        %284 = vmatprep.mubr.bf16.mxu0 0
        %285 = vmatmul.mubr.bf16.gmra.mrb[0].mxu0 %v228
        %v286 = vpop.f32.mrb[0].mxu0
        %v287 = vadd.f32 0.0, %v286
        %v288 = vpop.f32.mrb[0].mxu0
        %v289 = vpop.f32.mrb[0].mxu0
        %v290 = vadd.f32 0.0, %v289
        %v291 = vpop.f32.mrb[0].mxu0
        %292 = vmatprep.mubr.bf16.mxu0 0
        %293 = vmatmul.mubr.bf16.gmra.mrb[0].mxu0 %v229
        %v294 = vpop.f32.mrb[0].mxu0
        %v295 = vadd.f32 0.0, %v294
        %v296 = vpop.f32.mrb[0].mxu0
        %v297 = vpop.f32.mrb[0].mxu0
        %v298 = vadd.f32 0.0, %v297
        %v299 = vpop.f32.mrb[0].mxu0
        %300 = vmatprep.mubr.bf16.mxu0 0
        %301 = vmatmul.mubr.bf16.gmra.mrb[0].mxu0 %v230
        %v302 = vpop.f32.mrb[0].mxu0
        %v303 = vadd.f32 0.0, %v302
        %v304 = vpop.f32.mrb[0].mxu0
        %v305 = vpop.f32.mrb[0].mxu0
        %v306 = vadd.f32 0.0, %v305
        %v307 = vpop.f32.mrb[0].mxu0
        %308 = vmatprep.mubr.bf16.mxu0 0
        %309 = vmatmul.mubr.bf16.gmra.mrb[0].mxu0 %v231
        %v310 = vpop.f32.mrb[0].mxu0
        %v311 = vadd.f32 0.0, %v310
        %v312 = vpop.f32.mrb[0].mxu0
        %v313 = vpop.f32.mrb[0].mxu0
        %v314 = vadd.f32 0.0, %v313
        %v315 = vpop.f32.mrb[0].mxu0
        %316 = vmatprep.mubr.bf16.mxu0 0
        %317 = vmatmul.mubr.bf16.gmra.mrb[0].mxu0 %v232
        %v318 = vpop.f32.mrb[0].mxu0
        %v319 = vadd.f32 0.0, %v318
        %v320 = vpop.f32.mrb[0].mxu0
        %v321 = vpop.f32.mrb[0].mxu0
        %v322 = vadd.f32 0.0, %v321
        %v323 = vpop.f32.mrb[0].mxu0
        %324 = vmatprep.mubr.bf16.mxu0 0
        %325 = vmatmul.mubr.bf16.gmra.mrb[0].mxu0 %v233
        %v326 = vpop.f32.mrb[0].mxu0
        %v327 = vadd.f32 0.0, %v326
        %v328 = vpop.f32.mrb[0].mxu0
        %v329 = vpop.f32.mrb[0].mxu0
        %v330 = vadd.f32 0.0, %v329
        %v331 = vpop.f32.mrb[0].mxu0
        %332 = vmatprep.mubr.bf16.mxu0 0
        %333 = vmatmul.mubr.bf16.gmra.mrb[0].mxu0 %v234
        %v334 = vpop.f32.mrb[0].mxu0
        %v335 = vadd.f32 0.0, %v334
        %v336 = vpop.f32.mrb[0].mxu0
        %v337 = vpop.f32.mrb[0].mxu0
        %v338 = vadd.f32 0.0, %v337
        %v339 = vpop.f32.mrb[0].mxu0
        %340 = vmatprep.mubr.bf16.mxu0 0
        %341 = vmatmul.mubr.bf16.gmra.mrb[0].mxu0 %v235
        %v342 = vpop.f32.mrb[0].mxu0
        %v343 = vadd.f32 0.0, %v342
        %v344 = vpop.f32.mrb[0].mxu0
        %v345 = vpop.f32.mrb[0].mxu0
        %v346 = vadd.f32 0.0, %v345
        %v347 = vpop.f32.mrb[0].mxu0
        %348 = vdwg.mxu0
        %v349 = vpack.c.bf16 %v290, %v287
        %v350 = vpack.c.bf16 %v298, %v295
        %v351 = vpack.c.bf16 %v306, %v303
        %v352 = vpack.c.bf16 %v314, %v311
        %v353 = vpack.c.bf16 %v322, %v319
        %v354 = vpack.c.bf16 %v330, %v327
        %v355 = vpack.c.bf16 %v338, %v335
        %v356 = vpack.c.bf16 %v346, %v343
        %v373 = vunpack.c.l.b16 %v236
        %v374 = vunpack.c.l.b16 %v237
        %v375 = vunpack.c.l.b16 %v238
        %v376 = vunpack.c.l.b16 %v239
        %v377 = vunpack.c.l.b16 %v240
        %v378 = vunpack.c.l.b16 %v241
        %v379 = vunpack.c.l.b16 %v242
        %v380 = vunpack.c.l.b16 %v243
        %v381 = vunpack.c.l.b16 %v244
        %v382 = vunpack.c.l.b16 %v245
        %v383 = vunpack.c.l.b16 %v246
        %v384 = vunpack.c.l.b16 %v247
        %v385 = vunpack.c.l.b16 %v248
        %v386 = vunpack.c.l.b16 %v249
        %v387 = vunpack.c.l.b16 %v250
        %v388 = vunpack.c.l.b16 %v251
        %v389 = vpack.c.b16 %v374, %v373
        %v390 = vpack.c.b16 %v376, %v375
        %v391 = vpack.c.b16 %v378, %v377
        %v392 = vpack.c.b16 %v380, %v379
        %v393 = vpack.c.b16 %v382, %v381
        %v394 = vpack.c.b16 %v384, %v383
        %v395 = vpack.c.b16 %v386, %v385
        %v396 = vpack.c.b16 %v388, %v387
        %405 = vmatprep.subr.bf16.mxu0 0
        %406 = vmatpush1.bf16.msra.mxu0 %v389
        %407 = vmatprep.subr.bf16.mxu0 0
        %408 = vmatpush1.bf16.msra.mxu0 %v390
        %409 = vmatprep.subr.bf16.mxu0 0
        %410 = vmatpush1.bf16.msra.mxu0 %v391
        %411 = vmatprep.subr.bf16.mxu0 0
        %412 = vmatpush1.bf16.msra.mxu0 %v392
        %413 = vmatprep.subr.bf16.mxu0 0
        %414 = vmatpush1.bf16.msra.mxu0 %v393
        %415 = vmatprep.subr.bf16.mxu0 0
        %416 = vmatpush1.bf16.msra.mxu0 %v394
        %417 = vmatprep.subr.bf16.mxu0 0
        %418 = vmatpush1.bf16.msra.mxu0 %v395
        %419 = vmatprep.subr.bf16.mxu0 0
        %420 = vmatpush1.bf16.msra.mxu0 %v396
        %421 = vmatprep.subr.bf16.mxu0 0
        %422 = vmatpush1.bf16.msra.mxu0 0
        %423 = vmatprep.subr.bf16.mxu0 0
        %424 = vmatpush1.bf16.msra.mxu0 0
        %425 = vmatprep.subr.bf16.mxu0 0
        %426 = vmatpush1.bf16.msra.mxu0 0
        %427 = vmatprep.subr.bf16.mxu0 0
        %428 = vmatpush1.bf16.msra.mxu0 0
        %429 = vmatprep.subr.bf16.mxu0 0
        %430 = vmatpush1.bf16.msra.mxu0 0
        %431 = vmatprep.subr.bf16.mxu0 0
        %432 = vmatpush1.bf16.msra.mxu0 0
        %433 = vmatprep.subr.bf16.mxu0 0
        %434 = vmatpush1.bf16.msra.mxu0 0
        %435 = vmatprep.subr.bf16.mxu0 0
        %436 = vmatpush1.bf16.msra.mxu0 0
        %437 = vmatprep.mubr.bf16.mxu0 0
        %438 = vmatmul.mubr.bf16.gmra.mrb[0].mxu0 %v349
        %v439 = vpop.f32.mrb[0].mxu0
        %v440 = vadd.f32 0.0, %v439
        %v441 = vpop.f32.mrb[0].mxu0
        %v442 = vpop.f32.mrb[0].mxu0
        %v443 = vadd.f32 0.0, %v442
        %v444 = vpop.f32.mrb[0].mxu0
        %445 = vmatprep.mubr.bf16.mxu0 0
        %446 = vmatmul.mubr.bf16.gmra.mrb[0].mxu0 %v350
        %v447 = vpop.f32.mrb[0].mxu0
        %v448 = vadd.f32 0.0, %v447
        %v449 = vpop.f32.mrb[0].mxu0
        %v450 = vpop.f32.mrb[0].mxu0
        %v451 = vadd.f32 0.0, %v450
        %v452 = vpop.f32.mrb[0].mxu0
        %453 = vmatprep.mubr.bf16.mxu0 0
        %454 = vmatmul.mubr.bf16.gmra.mrb[0].mxu0 %v351
        %v455 = vpop.f32.mrb[0].mxu0
        %v456 = vadd.f32 0.0, %v455
        %v457 = vpop.f32.mrb[0].mxu0
        %v458 = vpop.f32.mrb[0].mxu0
        %v459 = vadd.f32 0.0, %v458
        %v460 = vpop.f32.mrb[0].mxu0
        %461 = vmatprep.mubr.bf16.mxu0 0
        %462 = vmatmul.mubr.bf16.gmra.mrb[0].mxu0 %v352
        %v463 = vpop.f32.mrb[0].mxu0
        %v464 = vadd.f32 0.0, %v463
        %v465 = vpop.f32.mrb[0].mxu0
        %v466 = vpop.f32.mrb[0].mxu0
        %v467 = vadd.f32 0.0, %v466
        %v468 = vpop.f32.mrb[0].mxu0
        %469 = vmatprep.mubr.bf16.mxu0 0
        %470 = vmatmul.mubr.bf16.gmra.mrb[0].mxu0 %v353
        %v471 = vpop.f32.mrb[0].mxu0
        %v472 = vadd.f32 0.0, %v471
        %v473 = vpop.f32.mrb[0].mxu0
        %v474 = vpop.f32.mrb[0].mxu0
        %v475 = vadd.f32 0.0, %v474
        %v476 = vpop.f32.mrb[0].mxu0
        %477 = vmatprep.mubr.bf16.mxu0 0
        %478 = vmatmul.mubr.bf16.gmra.mrb[0].mxu0 %v354
        %v479 = vpop.f32.mrb[0].mxu0
        %v480 = vadd.f32 0.0, %v479
        %v481 = vpop.f32.mrb[0].mxu0
        %v482 = vpop.f32.mrb[0].mxu0
        %v483 = vadd.f32 0.0, %v482
        %v484 = vpop.f32.mrb[0].mxu0
        %485 = vmatprep.mubr.bf16.mxu0 0
        %486 = vmatmul.mubr.bf16.gmra.mrb[0].mxu0 %v355
        %v487 = vpop.f32.mrb[0].mxu0
        %v488 = vadd.f32 0.0, %v487
        %v489 = vpop.f32.mrb[0].mxu0
        %v490 = vpop.f32.mrb[0].mxu0
        %v491 = vadd.f32 0.0, %v490
        %v492 = vpop.f32.mrb[0].mxu0
        %493 = vmatprep.mubr.bf16.mxu0 0
        %494 = vmatmul.mubr.bf16.gmra.mrb[0].mxu0 %v356
        %v495 = vpop.f32.mrb[0].mxu0
        %v496 = vadd.f32 0.0, %v495
        %v497 = vpop.f32.mrb[0].mxu0
        %v498 = vpop.f32.mrb[0].mxu0
        %v499 = vadd.f32 0.0, %v498
        %v500 = vpop.f32.mrb[0].mxu0
        %501 = vdwg.mxu0
        %v502 = vadd.f32 %v440, %v443
        %v503 = vadd.f32 %v502, %v448
        %v504 = vadd.f32 %v503, %v451
        %v505 = vadd.f32 %v504, %v456
        %v506 = vadd.f32 %v505, %v459
        %v507 = vadd.f32 %v506, %v464
        %v508 = vadd.f32 %v507, %v467
        %v509 = vadd.f32 %v508, %v472
        %v510 = vadd.f32 %v509, %v475
        %v511 = vadd.f32 %v510, %v480
        %v512 = vadd.f32 %v511, %v483
        %v513 = vadd.f32 %v512, %v488
        %v514 = vadd.f32 %v513, %v491
        %v515 = vadd.f32 %v514, %v496
        %v516 = vadd.f32 %v515, %v499
        %v517 = vrot.slane %v516, 4
        %v518 = vadd.f32 %v516, %v517
        %v519 = vrot.slane %v518, 2
        %v520 = vadd.f32 %v518, %v519
        %v521 = vrot.slane %v520, 1
        %v522 = vadd.f32 %v520, %v521
        %v523 = vmul.f32 %v440, %v440
        %v524 = vmul.f32 %v443, %v443
        %v525 = vmul.f32 %v448, %v448
        %v526 = vmul.f32 %v451, %v451
        %v527 = vmul.f32 %v456, %v456
        %v528 = vmul.f32 %v459, %v459
        %v529 = vmul.f32 %v464, %v464
        %v530 = vmul.f32 %v467, %v467
        %v531 = vmul.f32 %v472, %v472
        %v532 = vmul.f32 %v475, %v475
        %v533 = vmul.f32 %v480, %v480
        %v534 = vmul.f32 %v483, %v483
        %v535 = vmul.f32 %v488, %v488
        %v536 = vmul.f32 %v491, %v491
        %v537 = vmul.f32 %v496, %v496
        %v538 = vmul.f32 %v499, %v499
        %v539 = vadd.f32 %v523, %v524
        %v540 = vadd.f32 %v539, %v525
        %v541 = vadd.f32 %v540, %v526
        %v542 = vadd.f32 %v541, %v527
        %v543 = vadd.f32 %v542, %v528
        %v544 = vadd.f32 %v543, %v529
        %v545 = vadd.f32 %v544, %v530
        %v546 = vadd.f32 %v545, %v531
        %v547 = vadd.f32 %v546, %v532
        %v548 = vadd.f32 %v547, %v533
        %v549 = vadd.f32 %v548, %v534
        %v550 = vadd.f32 %v549, %v535
        %v551 = vadd.f32 %v550, %v536
        %v552 = vadd.f32 %v551, %v537
        %v553 = vadd.f32 %v552, %v538
        %v554 = vrot.slane %v553, 4
        %v555 = vadd.f32 %v553, %v554
        %v556 = vrot.slane %v555, 2
        %v557 = vadd.f32 %v555, %v556
        %v558 = vrot.slane %v557, 1
        %v559 = vadd.f32 %v557, %v558
        %v560 = vmul.f32 %v522, 0.015625
        %v561 = vmul.f32 %v559, 0.015625
        %v562 = vmul.f32 %v560, %v560
        %v563 = vsub.f32 %v561, %v562
        %v564 = vmax.f32 %v563, 0.0
        %v565 = vld [vmem:[%s168] sm:$0x1]
        %v566 = vld [vmem:[%s168 + $0x1] sm:$0x1]
        %v567 = vadd.f32 %v564, 1e-05
        %v568 = vrsqrt.pop %v567
        %v569 = vmul.f32 %v565, %v568
        %v570 = vmul.f32 %v560, %v569
        %v571 = vsub.f32 %v566, %v570
        %v572 = vlaneseq
        %v573 = vshrl.u32 %v572, 7
        %v574 = vsub.s32 0, %v573
        %v575 = vrot.slane %v569, %v574
        %v576 = vmul.f32 %v440, %v575
        %v577 = vmul.f32 %v443, %v575
        %v578 = vmul.f32 %v448, %v575
        %v579 = vmul.f32 %v451, %v575
        %v580 = vmul.f32 %v456, %v575
        %v581 = vmul.f32 %v459, %v575
        %v582 = vmul.f32 %v464, %v575
        %v583 = vmul.f32 %v467, %v575
        %v584 = vmul.f32 %v472, %v575
        %v585 = vmul.f32 %v475, %v575
        %v586 = vmul.f32 %v480, %v575
        %v587 = vmul.f32 %v483, %v575
        %v588 = vmul.f32 %v488, %v575
        %v589 = vmul.f32 %v491, %v575
        %v590 = vmul.f32 %v496, %v575
        %v591 = vmul.f32 %v499, %v575
        %v592 = vlaneseq
        %v593 = vshrl.u32 %v592, 7
        %v594 = vsub.s32 0, %v593
        %v595 = vrot.slane %v571, %v594
        %v596 = vadd.f32 %v576, %v595
        %v597 = vadd.f32 %v577, %v595
        %v598 = vadd.f32 %v578, %v595
        %v599 = vadd.f32 %v579, %v595
        %v600 = vadd.f32 %v580, %v595
        %v601 = vadd.f32 %v581, %v595
        %v602 = vadd.f32 %v582, %v595
        %v603 = vadd.f32 %v583, %v595
        %v604 = vadd.f32 %v584, %v595
        %v605 = vadd.f32 %v585, %v595
        %v606 = vadd.f32 %v586, %v595
        %v607 = vadd.f32 %v587, %v595
        %v608 = vadd.f32 %v588, %v595
        %v609 = vadd.f32 %v589, %v595
        %v610 = vadd.f32 %v590, %v595
        %v611 = vadd.f32 %v591, %v595
        %v612 = vmax.f32 %v596, 0.0
        %v613 = vmax.f32 %v597, 0.0
        %v614 = vmax.f32 %v598, 0.0
        %v615 = vmax.f32 %v599, 0.0
        %v616 = vmax.f32 %v600, 0.0
        %v617 = vmax.f32 %v601, 0.0
        %v618 = vmax.f32 %v602, 0.0
        %v619 = vmax.f32 %v603, 0.0
        %v620 = vmax.f32 %v604, 0.0
        %v621 = vmax.f32 %v605, 0.0
        %v622 = vmax.f32 %v606, 0.0
        %v623 = vmax.f32 %v607, 0.0
        %v624 = vmax.f32 %v608, 0.0
        %v625 = vmax.f32 %v609, 0.0
        %v626 = vmax.f32 %v610, 0.0
        %v627 = vmax.f32 %v611, 0.0
        %628 = vst [vmem:[#allocation7] sm:$0xff] %v612
        %629 = vst [vmem:[#allocation7 + $0x8] sm:$0xff] %v613
        %630 = vst [vmem:[#allocation7 + $0x10] sm:$0xff] %v614
        %631 = vst [vmem:[#allocation7 + $0x18] sm:$0xff] %v615
        %632 = vst [vmem:[#allocation7 + $0x20] sm:$0xff] %v616
        %633 = vst [vmem:[#allocation7 + $0x28] sm:$0xff] %v617
        %634 = vst [vmem:[#allocation7 + $0x30] sm:$0xff] %v618
        %635 = vst [vmem:[#allocation7 + $0x38] sm:$0xff] %v619
        %636 = vst [vmem:[#allocation7 + $0x40] sm:$0xff] %v620
        %637 = vst [vmem:[#allocation7 + $0x48] sm:$0xff] %v621
        %638 = vst [vmem:[#allocation7 + $0x50] sm:$0xff] %v622
        %639 = vst [vmem:[#allocation7 + $0x58] sm:$0xff] %v623
        %640 = vst [vmem:[#allocation7 + $0x60] sm:$0xff] %v624
        %641 = vst [vmem:[#allocation7 + $0x68] sm:$0xff] %v625
        %642 = vst [vmem:[#allocation7 + $0x70] sm:$0xff] %v626
        %643 = vst [vmem:[#allocation7 + $0x78] sm:$0xff] %v627
        // Predicated region
        $region45: #{tpu_custom_call.1} parent=27 // pred_check
          %p644 = pneg %p84
        $region46: #{tpu_custom_call.1} parent=27 // pred_check_branch
          %646 = sbr.rel (%p644) target = $region48
        $region47: #{tpu_custom_call.1} parent=27 // pred_region
          %s648 = ssub.s32 2048, 2048
          %649 = vsyncadd [#allocation6], %s648
          %s650 = sshll.u32 [#allocation7], 4
          %s651 = int_to_ptr.vmem [resolvable:$true] %s650
          %656 = dma.vmem_to_hbm [thread:$0]  %s651, 2048, %s4, [#allocation6], 128, 128, 8
        $region48: #{tpu_custom_call.1} parent=27 // pred_fallthru
          _
        // Predicated region
        $region49: #{tpu_custom_call.1} parent=27 // pred_check
          %p657 = pneg %p84
        $region50: #{tpu_custom_call.1} parent=27 // pred_check_branch
          %659 = sbr.rel (%p657) target = $region52
        $region51: #{tpu_custom_call.1} parent=27 // pred_region
          %660 = dma.done [#allocation6], 2048
        $region52: #{tpu_custom_call.1} parent=27 // pred_fallthru
          _
      $region28: #{tpu_custom_call.1} parent=5 // pred_fallthru
        _
      %p661 = scmp.le.s32.totalorder 2, %s14
      // Predicated region
      $region53: #{tpu_custom_call.1} parent=5 // pred_check
        %p662 = pneg %p661
      $region54: #{tpu_custom_call.1} parent=5 // pred_check_branch
        %664 = sbr.rel (%p662) target = $region56
      $region55: #{tpu_custom_call.1} parent=5 // pred_region
        %s665 = ssub.s32 %s14, 2
      $region56: #{tpu_custom_call.1} parent=5 // pred_fallthru
        _
    $region6: #{tpu_custom_call.1} parent=1 // loop_footer
      %s18 = sadd.s32 1, %s14
    $region7: #{tpu_custom_call.1} parent=1 // loop_footer_branch
      %13 = sbr.rel target = $region3
    $region8: #{tpu_custom_call.1} parent=1 // loop_exit
      _
    %666 = vsyncpa [#allocation5], 1
    %s667 = scalar_lea.sflag [#allocation5], 1
    %668 = vsyncpa %s667, 1
    %669 = vsyncpa [#allocation6], 1
    %s670 = scalar_lea.sflag [#allocation6], 1
    %671 = vsyncpa %s670, 1
  %672 = vsyncmov [#allocation3]
  %s673 = vpop.sfrf %672
  %p674 = scmp.eq.s32.totalorder %s673, 0
  %p675 = pneg %p674
  %677 = shalt.err (%p675)
  %s678 = scalar_lea.sflag [#allocation3], 1
  %679 = vsyncmov %s678
  %s680 = vpop.sfrf %679
  %p681 = scmp.eq.s32.totalorder %s680, 0
  %p682 = pneg %p681
  %684 = shalt.err (%p682)

</llo_original>
